<compile_context>
chip_gen: v7x
topology: tpu7x:2x2x1
jax: 0.10.0
libtpu: 0.0.40
codegen_flags: <defaults>
</compile_context>

<pallas_src>
import functools

import jax
import jax.numpy as jnp
from jax import lax
from jax.experimental import pallas as pl
from jax.experimental.pallas import tpu as pltpu


def _mmd_kernel(src_ref, tgt_ref, out_ref, tot_ref, *,
                kernel_mul, kernel_num, fix_sigma):
    """src_ref/tgt_ref: (B, D) VMEM. out_ref: (1, 1) f32 SMEM. tot_ref: (2B, D) f32 VMEM."""
    b, _ = src_ref.shape
    n = 2 * b

    s32 = src_ref[...].astype(jnp.float32)
    t32 = tgt_ref[...].astype(jnp.float32)

    # Center the combined data (pairwise distances are translation invariant).
    # This removes the cancellation risk of the Gram-form distances when the
    # inputs share a large offset.
    mean = (jnp.sum(s32, axis=0, keepdims=True)
            + jnp.sum(t32, axis=0, keepdims=True)) * jnp.float32(1.0 / n)
    tot_ref[0:b, :] = s32 - mean
    tot_ref[b:n, :] = t32 - mean
    x = tot_ref[...]                                   # (2B, D) f32, centered

    # One Gram matrix on the MXU, contracting the feature axis of both operands
    # (no transposed operand materialized), f32 accumulation.
    dn = (((1,), (1,)), ((), ()))
    g = lax.dot_general(x, x, dn, preferred_element_type=jnp.float32)  # (n, n)

    row_ids = lax.broadcasted_iota(jnp.int32, (n, n), 0)
    col_ids = lax.broadcasted_iota(jnp.int32, (n, n), 1)

    # Row/column squared norms from the Gram diagonal (keepdims reduces only;
    # no 1-D arrays, no skinny transposes).
    g_diag = jnp.where(row_ids == col_ids, g, 0.0)
    sq_col = jnp.sum(g_diag, axis=1, keepdims=True)    # (n, 1): ||x_i||^2
    sq_row = jnp.sum(g_diag, axis=0, keepdims=True)    # (1, n): ||x_j||^2

    # Negated pairwise squared distances, clamped to <= 0 (diag becomes exactly
    # 0, matching torch where exp(-0/bw) == 1).
    neg = jnp.minimum(2.0 * g - sq_col - sq_row, 0.0)  # (n, n), == -L2

    # Quadrant signs folded into one weight tile: +1 for XX/YY, -1 for XY/YX.
    w = jnp.where(jnp.logical_xor(row_ids < b, col_ids < b), -1.0, 1.0)

    # Bandwidth: torch semantics, sum of the full L2 matrix / (n^2 - n).
    if fix_sigma:   # torch uses truthiness; must be a static Python number
        bandwidth = jnp.float32(fix_sigma)
    else:
        bandwidth = -jnp.sum(neg) / jnp.float32(n * n - n)
    bandwidth = bandwidth / jnp.float32(kernel_mul ** (kernel_num // 2))
    inv_base = 1.0 / bandwidth

    # Bandwidth loop: elementwise accumulation only (mul + EUP exp + add per
    # vreg); the single weighted reduction happens once after the loop.
    acc = jnp.exp(neg * inv_base)
    for i in range(1, kernel_num):
        acc = acc + jnp.exp(neg * (inv_base * jnp.float32(kernel_mul ** (-i))))

    # mean(XX + YY - XY - YX) = sum(sign-weighted kernel) / B^2
    out_ref[0, 0] = jnp.sum(acc * w) / jnp.float32(b * b)


def linear_mmd_loss(source, target, kernel_mul=2.0, kernel_num=5, fix_sigma=None):
    """Pallas implementation of LinearMMDLoss.forward(source, target)."""
    assert source.shape == target.shape and source.ndim == 2
    b, d = source.shape
    kernel = functools.partial(
        _mmd_kernel,
        kernel_mul=kernel_mul,
        kernel_num=kernel_num,
        fix_sigma=fix_sigma,
    )
    out = pl.pallas_call(
        kernel,
        out_shape=jax.ShapeDtypeStruct((1, 1), jnp.float32),
        in_specs=[pl.BlockSpec(memory_space=pltpu.MemorySpace.VMEM),
                  pl.BlockSpec(memory_space=pltpu.MemorySpace.VMEM)],
        out_specs=pl.BlockSpec(memory_space=pltpu.MemorySpace.SMEM),
        scratch_shapes=[pltpu.VMEM((2 * b, d), jnp.float32)],
        cost_estimate=pl.CostEstimate(
            flops=2 * (2 * b) * (2 * b) * d,
            transcendentals=kernel_num * (2 * b) * (2 * b),
            bytes_accessed=2 * b * d * source.dtype.itemsize + 4,
        ),
    )(source, target)
    return out[0, 0]


def _ref_mmd(source, target, kernel_mul=2.0, kernel_num=5, fix_sigma=None):
    """Pure-JAX reference mirroring the PyTorch module exactly."""
    b = source.shape[0]
    total = jnp.concatenate([source, target], axis=0).astype(jnp.float32)
    n = total.shape[0]
    diff = total[None, :, :] - total[:, None, :]
    l2 = jnp.sum(diff * diff, axis=2)
    if fix_sigma:
        bw = jnp.float32(fix_sigma)
    else:
        bw = jnp.sum(l2) / jnp.float32(n * n - n)
    bw = bw / (kernel_mul ** (kernel_num // 2))
    kern = sum(jnp.exp(-l2 / (bw * kernel_mul ** i)) for i in range(kernel_num))
    return jnp.mean(kern[:b, :b] + kern[b:, b:] - kern[:b, b:] - kern[b:, :b])


if __name__ == "__main__":
    key = jax.random.PRNGKey(0)
    k_src, k_tgt = jax.random.split(key)
    B, D = 8, 32                          # small shapes: batch=8, hidden=32
    source = jax.random.normal(k_src, (B, D), dtype=jnp.float32)
    target = jax.random.normal(k_tgt, (B, D), dtype=jnp.float32) + 0.5

    # Data-driven bandwidth path.
    loss = jax.block_until_ready(linear_mmd_loss(source, target))
    ref = jax.block_until_ready(_ref_mmd(source, target))
    assert jnp.allclose(loss, ref, rtol=1e-3, atol=1e-3), (loss, ref)

    # Fixed-sigma path.
    loss_fs = jax.block_until_ready(linear_mmd_loss(source, target, fix_sigma=1.5))
    ref_fs = jax.block_until_ready(_ref_mmd(source, target, fix_sigma=1.5))
    assert jnp.allclose(loss_fs, ref_fs, rtol=1e-3, atol=1e-3), (loss_fs, ref_fs)

    # Large common offset: exercises the in-kernel centering (Gram-form
    # distances would otherwise lose precision to cancellation).
    loss_off = jax.block_until_ready(linear_mmd_loss(source + 100.0, target + 100.0))
    ref_off = jax.block_until_ready(_ref_mmd(source + 100.0, target + 100.0))
    assert jnp.allclose(loss_off, ref_off, rtol=1e-3, atol=1e-3), (loss_off, ref_off)

    print("KERNEL_OK")
</pallas_src>

<mosaic_0001>
module attributes {stable_mosaic.version = 11 : i64} {
  func.func @_mmd_kernel(%arg0: memref<8x32xf32, #tpu.memory_space<vmem>>, %arg1: memref<8x32xf32, #tpu.memory_space<vmem>>, %arg2: memref<1x1xf32, #tpu.memory_space<smem>>, %arg3: memref<16x32xf32, #tpu.memory_space<vmem>>) attributes {dimension_semantics = [], scalar_prefetch = 0 : i64, scratch_operands = 1 : i64, tpu.core_type = #tpu.core_type<tc>} {
    %c0 = arith.constant 0 : index
    %c0_0 = arith.constant 0 : index
    %0 = vector.load %arg0[%c0, %c0_0] : memref<8x32xf32, #tpu.memory_space<vmem>>, vector<8x32xf32>
    %c0_1 = arith.constant 0 : index
    %c0_2 = arith.constant 0 : index
    %1 = vector.load %arg1[%c0_1, %c0_2] : memref<8x32xf32, #tpu.memory_space<vmem>>, vector<8x32xf32>
    %cst = arith.constant dense<0.000000e+00> : vector<32xf32>
    %2 = vector.multi_reduction <add>, %0, %cst [0] : vector<8x32xf32> to vector<32xf32>
    %3 = vector.shape_cast %2 : vector<32xf32> to vector<1x32xf32>
    %cst_3 = arith.constant dense<0.000000e+00> : vector<32xf32>
    %4 = vector.multi_reduction <add>, %1, %cst_3 [0] : vector<8x32xf32> to vector<32xf32>
    %5 = vector.shape_cast %4 : vector<32xf32> to vector<1x32xf32>
    %6 = arith.addf %3, %5 : vector<1x32xf32>
    %cst_4 = arith.constant 6.250000e-02 : f32
    %7 = vector.broadcast %cst_4 : f32 to vector<1x32xf32>
    %8 = arith.mulf %6, %7 : vector<1x32xf32>
    %9 = vector.broadcast %8 : vector<1x32xf32> to vector<8x32xf32>
    %10 = arith.subf %0, %9 : vector<8x32xf32>
    %c0_5 = arith.constant 0 : index
    %c0_6 = arith.constant 0 : index
    %11 = vector.load %arg3[%c0_5, %c0_6] : memref<16x32xf32, #tpu.memory_space<vmem>>, vector<8x32xf32>
    tpu.vector_store %arg3[%c0_5, %c0_6], %10 {strides = array<i32>} : memref<16x32xf32, #tpu.memory_space<vmem>>, vector<8x32xf32>,
    %12 = vector.broadcast %8 : vector<1x32xf32> to vector<8x32xf32>
    %13 = arith.subf %1, %12 : vector<8x32xf32>
    %c8 = arith.constant 8 : index
    %c0_7 = arith.constant 0 : index
    %14 = vector.load %arg3[%c8, %c0_7] : memref<16x32xf32, #tpu.memory_space<vmem>>, vector<8x32xf32>
    tpu.vector_store %arg3[%c8, %c0_7], %13 {strides = array<i32>} : memref<16x32xf32, #tpu.memory_space<vmem>>, vector<8x32xf32>,
    %c0_8 = arith.constant 0 : index
    %c0_9 = arith.constant 0 : index
    %15 = vector.load %arg3[%c0_8, %c0_9] : memref<16x32xf32, #tpu.memory_space<vmem>>, vector<16x32xf32>
    %cst_10 = arith.constant dense<0.000000e+00> : vector<16x16xf32>
    %16 = tpu.matmul %15, %15, %cst_10 {dimension_numbers = #tpu.dot_dimension_numbers<[1], [1], [0], [0], [0, 0, 1, 0], [], []>} : vector<16x32xf32>, vector<16x32xf32>, vector<16x16xf32> -> vector<16x16xf32>
    %17 = tpu.iota {dimensions = array<i32: 0>} : vector<16x16xi32>
    %18 = tpu.iota {dimensions = array<i32: 1>} : vector<16x16xi32>
    %19 = arith.cmpi eq, %17, %18 : vector<16x16xi32>
    %cst_11 = arith.constant 0.000000e+00 : f32
    %20 = vector.broadcast %cst_11 : f32 to vector<16x16xf32>
    %21 = arith.select %19, %16, %20 : vector<16x16xi1>, vector<16x16xf32>
    %cst_12 = arith.constant dense<0.000000e+00> : vector<16xf32>
    %22 = vector.multi_reduction <add>, %21, %cst_12 [1] : vector<16x16xf32> to vector<16xf32>
    %23 = vector.shape_cast %22 : vector<16xf32> to vector<16x1xf32>
    %cst_13 = arith.constant dense<0.000000e+00> : vector<16xf32>
    %24 = vector.multi_reduction <add>, %21, %cst_13 [0] : vector<16x16xf32> to vector<16xf32>
    %25 = vector.shape_cast %24 : vector<16xf32> to vector<1x16xf32>
    %cst_14 = arith.constant 2.000000e+00 : f32
    %26 = vector.broadcast %cst_14 : f32 to vector<16x16xf32>
    %27 = arith.mulf %26, %16 : vector<16x16xf32>
    %28 = vector.broadcast %23 : vector<16x1xf32> to vector<16x16xf32>
    %29 = arith.subf %27, %28 : vector<16x16xf32>
    %30 = vector.broadcast %25 : vector<1x16xf32> to vector<16x16xf32>
    %31 = arith.subf %29, %30 : vector<16x16xf32>
    %cst_15 = arith.constant 0.000000e+00 : f32
    %32 = vector.broadcast %cst_15 : f32 to vector<16x16xf32>
    %33 = arith.minimumf %31, %32 : vector<16x16xf32>
    %c8_i32 = arith.constant 8 : i32
    %34 = vector.broadcast %c8_i32 : i32 to vector<16x16xi32>
    %35 = arith.cmpi slt, %17, %34 : vector<16x16xi32>
    %c8_i32_16 = arith.constant 8 : i32
    %36 = vector.broadcast %c8_i32_16 : i32 to vector<16x16xi32>
    %37 = arith.cmpi slt, %18, %36 : vector<16x16xi32>
    %38 = arith.xori %35, %37 : vector<16x16xi1>
    %cst_17 = arith.constant -1.000000e+00 : f32
    %cst_18 = arith.constant 1.000000e+00 : f32
    %39 = vector.broadcast %cst_17 : f32 to vector<16x16xf32>
    %40 = vector.broadcast %cst_18 : f32 to vector<16x16xf32>
    %41 = arith.select %38, %39, %40 : vector<16x16xi1>, vector<16x16xf32>
    %42 = vector.shape_cast %33 : vector<16x16xf32> to vector<1x16x16xf32>
    %cst_19 = arith.constant dense<0.000000e+00> : vector<1xf32>
    %43 = vector.multi_reduction <add>, %42, %cst_19 [1, 2] : vector<1x16x16xf32> to vector<1xf32>
    %44 = vector.shape_cast %43 : vector<1xf32> to vector<1x1x1xf32>
    %45 = vector.extract %44[0, 0, 0] : f32 from vector<1x1x1xf32>
    %cst_20 = arith.constant 0.000000e+00 : f32
    %46 = arith.subf %cst_20, %45 : f32
    %cst_21 = arith.constant 2.400000e+02 : f32
    %47 = arith.divf %46, %cst_21 : f32
    %cst_22 = arith.constant 4.000000e+00 : f32
    %48 = arith.divf %47, %cst_22 : f32
    %cst_23 = arith.constant 1.000000e+00 : f32
    %49 = arith.divf %cst_23, %48 : f32
    %50 = vector.broadcast %49 : f32 to vector<16x16xf32>
    %51 = arith.mulf %33, %50 : vector<16x16xf32>
    %52 = math.exp %51 : vector<16x16xf32>
    %cst_24 = arith.constant 5.000000e-01 : f32
    %53 = arith.mulf %49, %cst_24 : f32
    %54 = vector.broadcast %53 : f32 to vector<16x16xf32>
    %55 = arith.mulf %33, %54 : vector<16x16xf32>
    %56 = math.exp %55 : vector<16x16xf32>
    %57 = arith.addf %52, %56 : vector<16x16xf32>
    %cst_25 = arith.constant 2.500000e-01 : f32
    %58 = arith.mulf %49, %cst_25 : f32
    %59 = vector.broadcast %58 : f32 to vector<16x16xf32>
    %60 = arith.mulf %33, %59 : vector<16x16xf32>
    %61 = math.exp %60 : vector<16x16xf32>
    %62 = arith.addf %57, %61 : vector<16x16xf32>
    %cst_26 = arith.constant 1.250000e-01 : f32
    %63 = arith.mulf %49, %cst_26 : f32
    %64 = vector.broadcast %63 : f32 to vector<16x16xf32>
    %65 = arith.mulf %33, %64 : vector<16x16xf32>
    %66 = math.exp %65 : vector<16x16xf32>
    %67 = arith.addf %62, %66 : vector<16x16xf32>
    %cst_27 = arith.constant 6.250000e-02 : f32
    %68 = arith.mulf %49, %cst_27 : f32
    %69 = vector.broadcast %68 : f32 to vector<16x16xf32>
    %70 = arith.mulf %33, %69 : vector<16x16xf32>
    %71 = math.exp %70 : vector<16x16xf32>
    %72 = arith.addf %67, %71 : vector<16x16xf32>
    %73 = arith.mulf %72, %41 : vector<16x16xf32>
    %74 = vector.shape_cast %73 : vector<16x16xf32> to vector<1x16x16xf32>
    %cst_28 = arith.constant dense<0.000000e+00> : vector<1xf32>
    %75 = vector.multi_reduction <add>, %74, %cst_28 [1, 2] : vector<1x16x16xf32> to vector<1xf32>
    %76 = vector.shape_cast %75 : vector<1xf32> to vector<1x1x1xf32>
    %77 = vector.extract %76[0, 0, 0] : f32 from vector<1x1x1xf32>
    %cst_29 = arith.constant 6.400000e+01 : f32
    %78 = arith.divf %77, %cst_29 : f32
    %c0_30 = arith.constant 0 : index
    %c0_31 = arith.constant 0 : index
    %79 = memref.load %arg2[%c0_30, %c0_31] : memref<1x1xf32, #tpu.memory_space<smem>>
    memref.store %78, %arg2[%c0_30, %c0_31] : memref<1x1xf32, #tpu.memory_space<smem>>
    return
  }
}

</mosaic_0001>

<llo_original>
// kernel: tpu_custom_call.1
$region0: #{tpu_custom_call.1}
  #allocation0 [shape = 'u32[]', space=smem, size = 0x4, offset = 0x4, fixed_abs, tag = 'smem constant byte address 0x4 - core index']
  #allocation1 [shape = 'u32[144,128]{1,0:T(1,128)}', space=vmem, size = 0x12000, scoped, tag = 'internal scratch']
  #allocation2 [shape = 'f32[16,32]{1,0:T(8,128)}', space=vmem, size = 0x2000, scoped, tag = 'scratch operand']
  %s0 = inlined_call_operand.hbm [shape: f32[8,32], index: 0, kind: input, shape index: {}]
  %s1 = inlined_call_operand.hbm [shape: f32[8,32], index: 1, kind: input, shape index: {}]
  %s2 = inlined_call_operand.hbm [shape: f32[1,1], index: 2, kind: output, shape index: {}]
  %s3 = sld [smem:[#allocation0]]
  $region26: #{tpu_custom_call.1} parent=0
    _
  %s5 = ssub.s32 1, %s3
  %s6 = scalar_select 0, %s5, %s3
  $region1: #{tpu_custom_call.1} parent=0
    #allocation3 [shape = 'u8[4096]{0}', space=vmem, size = 0x1000, scoped, tag = 'input window, operand 0, single buffered']
    #allocation4 [shape = 's32[1]{0}', space=sflag, size = 0x4, scoped, tag = 'scoped memory for tpu_custom_call.1']
    #allocation5 [shape = 's32[1]{0}', space=sflag, size = 0x4, scoped, tag = 'scoped memory for tpu_custom_call.1']
    #allocation6 [shape = 'u8[4096]{0}', space=vmem, size = 0x1000, scoped, tag = 'input window, operand 1, single buffered']
    #allocation7 [shape = 's32[1]{0}', space=sflag, size = 0x4, scoped, tag = 'scoped memory for tpu_custom_call.1']
    #allocation8 [shape = 'u8[512]{0}', space=smem, size = 0x200, scoped, tag = 'output window, operand 0, single buffered']
    %7 = vsyncpa [#allocation4], 0
    %8 = vsyncpa [#allocation7], 0
    %9 = vsyncpa [#allocation5], 0
    // Predicated region
    $region2: #{tpu_custom_call.1} parent=1 // pred_check
      _
    $region3: #{tpu_custom_call.1} parent=1 // pred_check_branch
      %11 = sbr.rel (0) target = $region5
    $region4: #{tpu_custom_call.1} parent=1 // pred_region
      %s13 = ssub.s32 128, 128
      %14 = vsyncadd [#allocation4], %s13
      %s16 = sshll.u32 [#allocation3], 4
      %s17 = int_to_ptr.vmem [resolvable:$true] %s16
      %19 = dma.hbm_to_vmem [thread:$0]  %s0, 128, %s17, [#allocation4]
    $region5: #{tpu_custom_call.1} parent=1 // pred_fallthru
      _
    // Predicated region
    $region6: #{tpu_custom_call.1} parent=1 // pred_check
      _
    $region7: #{tpu_custom_call.1} parent=1 // pred_check_branch
      %21 = sbr.rel (0) target = $region9
    $region8: #{tpu_custom_call.1} parent=1 // pred_region
      %s23 = ssub.s32 128, 128
      %24 = vsyncadd [#allocation7], %s23
      %s26 = sshll.u32 [#allocation6], 4
      %s27 = int_to_ptr.vmem [resolvable:$true] %s26
      %29 = dma.hbm_to_vmem [thread:$0]  %s1, 128, %s27, [#allocation7]
    $region9: #{tpu_custom_call.1} parent=1 // pred_fallthru
      _
    // Predicated region
    $region10: #{tpu_custom_call.1} parent=1 // pred_check
      _
    $region11: #{tpu_custom_call.1} parent=1 // pred_check_branch
      %31 = sbr.rel (0) target = $region13
    $region12: #{tpu_custom_call.1} parent=1 // pred_region
      %32 = dma.done [#allocation4], 128
    $region13: #{tpu_custom_call.1} parent=1 // pred_fallthru
      _
    // Predicated region
    $region14: #{tpu_custom_call.1} parent=1 // pred_check
      _
    $region15: #{tpu_custom_call.1} parent=1 // pred_check_branch
      %34 = sbr.rel (0) target = $region17
    $region16: #{tpu_custom_call.1} parent=1 // pred_region
      %35 = dma.done [#allocation7], 128
    $region17: #{tpu_custom_call.1} parent=1 // pred_fallthru
      _
    %v36 = vld [vmem:[#allocation3] sm:$0xff]
    %v37 = vld [vmem:[#allocation6] sm:$0xff]
    %vm38 = vcmask 261120
    %v39 = vsel %vm38, %v36, 0.0
    %v40 = vrot.slane %v39, 4
    %v41 = vadd.f32 %v39, %v40
    %v42 = vrot.slane %v41, 2
    %v43 = vadd.f32 %v41, %v42
    %v44 = vrot.slane %v43, 1
    %v45 = vadd.f32 %v43, %v44
    %v46 = vsel %vm38, %v37, 0.0
    %v47 = vrot.slane %v46, 4
    %v48 = vadd.f32 %v46, %v47
    %v49 = vrot.slane %v48, 2
    %v50 = vadd.f32 %v48, %v49
    %v51 = vrot.slane %v50, 1
    %v52 = vadd.f32 %v50, %v51
    %v53 = vadd.f32 %v45, %v52
    %v54 = vmul.f32 %v53, 0.0625
    %v55 = vsub.f32 %v36, %v54
    %56 = vst.msk [vmem:[#allocation2] sm:$0xff] %vm38, %v55
    %v57 = vsub.f32 %v37, %v54
    %58 = vst.msk [vmem:[#allocation2 + $0x8] sm:$0xff] %vm38, %v57
    %v59 = vld [vmem:[#allocation2] sm:$0xff]
    %v60 = vld [vmem:[#allocation2 + $0x8] sm:$0xff]
    %v62 = vsel %vm38, %v59, 0
    %v65 = vsel %vm38, %v60, 0
    %67 = vmatprep.subr.mxu0 0.0
    %68 = vmatpush1.xpose.msra.mxu0 %v62
    %69 = vmatprep.subr.mxu0 0.0
    %70 = vmatpush1.xpose.msra.mxu0 %v65
    %71 = vmatprep.subr.mxu0 0.0
    %72 = vmatpush1.xpose.msra.mxu0 0.0
    %73 = vmatprep.subr.mxu0 0.0
    %74 = vmatpush1.xpose.msra.mxu0 0.0
    %75 = vmatprep.subr.mxu0 0.0
    %76 = vmatpush1.xpose.msra.mxu0 0.0
    %77 = vmatprep.subr.mxu0 0.0
    %78 = vmatpush1.xpose.msra.mxu0 0.0
    %79 = vmatprep.subr.mxu0 0.0
    %80 = vmatpush1.xpose.msra.mxu0 0.0
    %81 = vmatprep.subr.mxu0 0.0
    %82 = vmatpush1.xpose.msra.mxu0 0.0
    %83 = vmatprep.subr.mxu0 0.0
    %84 = vmatpush1.xpose.msra.mxu0 0.0
    %85 = vmatprep.subr.mxu0 0.0
    %86 = vmatpush1.xpose.msra.mxu0 0.0
    %87 = vmatprep.subr.mxu0 0.0
    %88 = vmatpush1.xpose.msra.mxu0 0.0
    %89 = vmatprep.subr.mxu0 0.0
    %90 = vmatpush1.xpose.msra.mxu0 0.0
    %91 = vmatprep.subr.mxu0 0.0
    %92 = vmatpush1.xpose.msra.mxu0 0.0
    %93 = vmatprep.subr.mxu0 0.0
    %94 = vmatpush1.xpose.msra.mxu0 0.0
    %95 = vmatprep.subr.mxu0 0.0
    %96 = vmatpush1.xpose.msra.mxu0 0.0
    %97 = vmatprep.subr.mxu0 0.0
    %98 = vmatpush1.xpose.msra.mxu0 0.0
    %99 = vmatprep.subr.mxu0 0.0
    %100 = vmatpush1.xpose.msra.mxu0 0.0
    %101 = vmatprep.subr.mxu0 0.0
    %102 = vmatpush1.xpose.msra.mxu0 0.0
    %103 = vmatprep.subr.mxu0 0.0
    %104 = vmatpush1.xpose.msra.mxu0 0.0
    %105 = vmatprep.subr.mxu0 0.0
    %106 = vmatpush1.xpose.msra.mxu0 0.0
    %107 = vmatprep.subr.mxu0 0.0
    %108 = vmatpush1.xpose.msra.mxu0 0.0
    %109 = vmatprep.subr.mxu0 0.0
    %110 = vmatpush1.xpose.msra.mxu0 0.0
    %111 = vmatprep.subr.mxu0 0.0
    %112 = vmatpush1.xpose.msra.mxu0 0.0
    %113 = vmatprep.subr.mxu0 0.0
    %114 = vmatpush1.xpose.msra.mxu0 0.0
    %115 = vmatprep.subr.mxu0 0.0
    %116 = vmatpush1.xpose.msra.mxu0 0.0
    %117 = vmatprep.subr.mxu0 0.0
    %118 = vmatpush1.xpose.msra.mxu0 0.0
    %119 = vmatprep.subr.mxu0 0.0
    %120 = vmatpush1.xpose.msra.mxu0 0.0
    %121 = vmatprep.subr.mxu0 0.0
    %122 = vmatpush1.xpose.msra.mxu0 0.0
    %123 = vmatprep.subr.mxu0 0.0
    %124 = vmatpush1.xpose.msra.mxu0 0.0
    %125 = vmatprep.subr.mxu0 0.0
    %126 = vmatpush1.xpose.msra.mxu0 0.0
    %127 = vmatprep.subr.mxu0 0.0
    %128 = vmatpush1.xpose.msra.mxu0 0.0
    %129 = vmatprep.subr.mxu0 0.0
    %130 = vmatpush1.xpose.msra.mxu0 0.0
    %131 = vmatprep.mubr.f32.mxu0 0.0
    %132 = vmatmul.mubr.f32.gmra.mrb[0].mxu0 %v62
    %v133 = vpop.f32.mrb[0].mxu0
    %v134 = vadd.f32 0.0, %v133
    %v135 = vpop.f32.mrb[0].mxu0
    %136 = vmatprep.mubr.f32.mxu0 0.0
    %137 = vmatmul.mubr.f32.gmra.mrb[0].mxu0 %v65
    %v138 = vpop.f32.mrb[0].mxu0
    %v139 = vadd.f32 0.0, %v138
    %v140 = vpop.f32.mrb[0].mxu0
    %141 = vdwg.mxu0
    %v142 = vlaneseq
    %v143 = vshrl.u32 %v142, 7
    %v144 = vadd.s32 %v143, 8
    %v145 = vlaneseq
    %v146 = vand.u32 %v145, 127
    %vm147 = vcmp.eq.s32.totalorder %v143, %v146
    %vm148 = vcmp.eq.s32.totalorder %v144, %v146
    %v149 = vsel %vm147, %v134, 0.0
    %v150 = vsel %vm148, %v139, 0.0
    %vm151 = vcmask 130048
    %v152 = vsel %vm151, %v149, 0.0
    %153 = vadd.xlane.f32.xlu0 %v152
    %v154 = vpop.xlane.xlu0 %153
    %v155 = vsel %vm151, %v150, 0.0
    %156 = vadd.xlane.f32.xlu0 %v155
    %v157 = vpop.xlane.xlu0 %156
    %v158 = vadd.f32 %v152, %v155
    %v159 = vrot.slane %v158, 4
    %v160 = vadd.f32 %v158, %v159
    %v161 = vrot.slane %v160, 2
    %v162 = vadd.f32 %v160, %v161
    %v163 = vrot.slane %v162, 1
    %v164 = vadd.f32 %v162, %v163
    %v165 = vmul.f32 %v134, 2.0
    %v166 = vmul.f32 %v139, 2.0
    %v167 = vsub.f32 %v165, %v154
    %v168 = vsub.f32 %v166, %v157
    %v169 = vsub.f32 %v167, %v164
    %v170 = vsub.f32 %v168, %v164
    %v171 = vmin.f32 %v169, 0.0
    %v172 = vmin.f32 %v170, 0.0
    %vm173 = vcmp.lt.s32.totalorder %v143, 8
    %vm174 = vcmp.lt.s32.totalorder %v144, 8
    %vm175 = vcmp.lt.s32.totalorder %v146, 8
    %vm176 = vmxor %vm173, %vm175
    %vm177 = vmxor %vm174, %vm175
    %v178 = vsel %vm176, -1.0, 1.0
    %v179 = vsel %vm177, -1.0, 1.0
    %v180 = vsel %vm151, %v171, 0.0
    %v181 = vsel %vm151, %v172, 0.0
    %v182 = vadd.f32 %v180, %v181
    %183 = vadd.xlane.f32.xlu0 %v182
    %v184 = vpop.xlane.xlu0 %183
    %v185 = vrot.slane %v184, 4
    %v186 = vadd.f32 %v184, %v185
    %v187 = vrot.slane %v186, 2
    %v188 = vadd.f32 %v186, %v187
    %v189 = vrot.slane %v188, 1
    %v190 = vadd.f32 %v188, %v189
    %s191 = vtos %v190
    %s192 = ssub.f32 0.0, %s191
    %v193 = vrcp.pop 240.0
    %s194 = vtos %v193
    %s195 = smul.f32 %s192, %s194
    %v196 = vrcp.pop 4.0
    %s197 = vtos %v196
    %s198 = smul.f32 %s195, %s197
    %v199 = vstv %s198
    %v200 = vrcp.pop %v199
    %s201 = vtos %v200
    %v202 = vstv %s201
    %v203 = vmul.f32 %v171, %v202
    %v204 = vmul.f32 %v172, %v202
    %v205 = vmul.f32 %v203, 1.442695
    %v206 = vpow.pop %v205
    %v207 = vmul.f32 %v204, 1.442695
    %v208 = vpow.pop %v207
    %s209 = smul.f32 %s201, 0.5
    %v210 = vstv %s209
    %v211 = vmul.f32 %v171, %v210
    %v212 = vmul.f32 %v172, %v210
    %v213 = vmul.f32 %v211, 1.442695
    %v214 = vpow.pop %v213
    %v215 = vmul.f32 %v212, 1.442695
    %v216 = vpow.pop %v215
    %v217 = vadd.f32 %v206, %v214
    %v218 = vadd.f32 %v208, %v216
    %s219 = smul.f32 %s201, 0.25
    %v220 = vstv %s219
    %v221 = vmul.f32 %v171, %v220
    %v222 = vmul.f32 %v172, %v220
    %v223 = vmul.f32 %v221, 1.442695
    %v224 = vpow.pop %v223
    %v225 = vmul.f32 %v222, 1.442695
    %v226 = vpow.pop %v225
    %v227 = vadd.f32 %v217, %v224
    %v228 = vadd.f32 %v218, %v226
    %s229 = smul.f32 %s201, 0.125
    %v230 = vstv %s229
    %v231 = vmul.f32 %v171, %v230
    %v232 = vmul.f32 %v172, %v230
    %v233 = vmul.f32 %v231, 1.442695
    %v234 = vpow.pop %v233
    %v235 = vmul.f32 %v232, 1.442695
    %v236 = vpow.pop %v235
    %v237 = vadd.f32 %v227, %v234
    %v238 = vadd.f32 %v228, %v236
    %s239 = smul.f32 %s201, 0.0625
    %v240 = vstv %s239
    %v241 = vmul.f32 %v171, %v240
    %v242 = vmul.f32 %v172, %v240
    %v243 = vmul.f32 %v241, 1.442695
    %v244 = vpow.pop %v243
    %v245 = vmul.f32 %v242, 1.442695
    %v246 = vpow.pop %v245
    %v247 = vadd.f32 %v237, %v244
    %v248 = vadd.f32 %v238, %v246
    %v249 = vmul.f32 %v247, %v178
    %v250 = vmul.f32 %v248, %v179
    %v251 = vsel %vm151, %v249, 0.0
    %v252 = vsel %vm151, %v250, 0.0
    %v253 = vadd.f32 %v251, %v252
    %254 = vadd.xlane.f32.xlu0 %v253
    %v255 = vpop.xlane.xlu0 %254
    %v256 = vrot.slane %v255, 4
    %v257 = vadd.f32 %v255, %v256
    %v258 = vrot.slane %v257, 2
    %v259 = vadd.f32 %v257, %v258
    %v260 = vrot.slane %v259, 1
    %v261 = vadd.f32 %v259, %v260
    %s262 = vtos %v261
    %v263 = vrcp.pop 64.0
    %s264 = vtos %v263
    %s265 = smul.f32 %s262, %s264
    %s266 = scalar_lea.smem [#allocation8], 0
    %267 = sst [smem:[%s266]] %s265
    // Predicated region
    $region18: #{tpu_custom_call.1} parent=1 // pred_check
      _
    $region19: #{tpu_custom_call.1} parent=1 // pred_check_branch
      %269 = sbr.rel (0) target = $region21
    $region20: #{tpu_custom_call.1} parent=1 // pred_region
      %s271 = ssub.s32 16, 16
      %272 = vsyncadd [#allocation5], %s271
      %275 = dma.smem_to_hbm [#allocation8], 16, %s2, [#allocation5]
    $region21: #{tpu_custom_call.1} parent=1 // pred_fallthru
      _
    // Predicated region
    $region22: #{tpu_custom_call.1} parent=1 // pred_check
      _
    $region23: #{tpu_custom_call.1} parent=1 // pred_check_branch
      %277 = sbr.rel (0) target = $region25
    $region24: #{tpu_custom_call.1} parent=1 // pred_region
      %278 = dma.done [#allocation5], 16
    $region25: #{tpu_custom_call.1} parent=1 // pred_fallthru
      _
    %279 = sfence
    %280 = vsyncpa [#allocation4], 1
    %281 = vsyncpa [#allocation7], 1
    %282 = vsyncpa [#allocation5], 1

</llo_original>
